<compile_context>
chip_gen: v5e
topology: v5e:2x2
jax: 0.10.0
libtpu: 0.0.40
codegen_flags: <defaults>
</compile_context>

<pallas_src>
import jax
import jax.numpy as jnp
from jax.experimental import pallas as pl
from jax.experimental.pallas import tpu as pltpu


def critic_kernel(x_ref, w1_ref, b1_ref, w2_ref, b2_ref, w3_ref, b3_ref, out_ref):
    # x_ref: (D, Bt) -- batch on lanes, features on sublanes.
    x = x_ref[...]

    # Layer 1: (H1, D) @ (D, Bt) -> (H1, Bt); f32 accumulation, f32 bias + ReLU.
    h1 = jnp.dot(w1_ref[...], x, preferred_element_type=jnp.float32) + b1_ref[...]
    h1 = jnp.maximum(h1, 0.0)

    # Layer 2: (H2, H1) @ (H1, Bt) -> (H2, Bt). Cast back to the streaming dtype
    # so the MXU stays on its native (e.g. bf16) path; accumulate in f32.
    h2 = jnp.dot(w2_ref[...], h1.astype(w2_ref.dtype),
                 preferred_element_type=jnp.float32) + b2_ref[...]
    h2 = jnp.maximum(h2, 0.0)

    # Layer 3: output width 1 -> skip the MXU. VPU broadcast-multiply with the
    # (H2, 1) weight column + cross-sublane (XLU) reduce -> (1, Bt).
    y = jnp.sum(w3_ref[...] * h2, axis=0, keepdims=True) + b3_ref[...]

    out_ref[...] = y.astype(out_ref.dtype)  # lane-dense (1, Bt) unmasked store


def critic_forward(state, w1, b1, w2, b2, w3, b3, *,
                   block_b=4096, compute_dtype=jnp.float32):
    """state: (B, D) f32. Weights in PyTorch (out, in) layout, biases (out,).

    Returns value: (B, 1) f32, matching CriticNetwork.forward.
    """
    B, D = state.shape
    H1 = w1.shape[0]
    H2 = w2.shape[0]

    # Batch-on-lanes layout: (D, B), padded to a lane-aligned tile. The wrapper
    # transpose is layout plumbing (tiny D), paid once outside the kernel.
    block_b = max(128, (block_b // 128) * 128)
    bt = min(block_b, ((B + 127) // 128) * 128)
    b_pad = ((B + bt - 1) // bt) * bt
    x = state.T.astype(compute_dtype)
    if b_pad != B:
        x = jnp.pad(x, ((0, 0), (0, b_pad - B)))

    # Weights in streaming dtype; biases kept f32 (added post-accumulation).
    w1c = w1.astype(compute_dtype)                      # (H1, D)
    w2c = w2.astype(compute_dtype)                      # (H2, H1)
    w3c = w3.reshape(-1, 1).astype(compute_dtype)       # (H2, 1) column for VPU reduce
    b1c = b1.reshape(-1, 1).astype(jnp.float32)         # (H1, 1)
    b2c = b2.reshape(-1, 1).astype(jnp.float32)         # (H2, 1)
    b3c = b3.reshape(1, 1).astype(jnp.float32)          # (1, 1)

    grid = (b_pad // bt,)
    itemsize = jnp.dtype(compute_dtype).itemsize
    cost = pl.CostEstimate(
        flops=2 * b_pad * (D * H1 + H1 * H2 + H2),
        transcendentals=0,
        bytes_accessed=(b_pad * D * itemsize            # state stream
                        + b_pad * 4                     # output
                        + (D * H1 + H1 * H2 + H2) * itemsize
                        + (H1 + H2 + 1) * 4),
    )

    out = pl.pallas_call(
        critic_kernel,
        out_shape=jax.ShapeDtypeStruct((1, b_pad), jnp.float32),
        grid=grid,
        in_specs=[
            pl.BlockSpec((D, bt), lambda i: (0, i)),      # state tile (double-buffered)
            pl.BlockSpec((H1, D), lambda i: (0, 0)),      # weights resident across iters
            pl.BlockSpec((H1, 1), lambda i: (0, 0)),
            pl.BlockSpec((H2, H1), lambda i: (0, 0)),
            pl.BlockSpec((H2, 1), lambda i: (0, 0)),
            pl.BlockSpec((H2, 1), lambda i: (0, 0)),
            pl.BlockSpec((1, 1), lambda i: (0, 0)),
        ],
        out_specs=pl.BlockSpec((1, bt), lambda i: (0, i)),
        compiler_params=pltpu.CompilerParams(
            dimension_semantics=("parallel",),            # v7x: shard batch over both TCs
        ),
        cost_estimate=cost,
    )(x, w1c, b1c, w2c, b2c, w3c, b3c)

    return out[:, :B].T                                   # (B, 1), PyTorch layout


def init_params(key, in_dim, fc1_dims=16, fc2_dims=16):
    """Deterministic PyTorch-Linear-style init: U(-1/sqrt(fan_in), 1/sqrt(fan_in)).

    Weights kept in PyTorch (out_features, in_features) layout.
    """
    ks = jax.random.split(key, 6)

    def lin(kw, kb, fan_in, fan_out):
        bound = 1.0 / jnp.sqrt(fan_in)
        w = jax.random.uniform(kw, (fan_out, fan_in), jnp.float32, -bound, bound)
        b = jax.random.uniform(kb, (fan_out,), jnp.float32, -bound, bound)
        return w, b

    w1, b1 = lin(ks[0], ks[1], in_dim, fc1_dims)
    w2, b2 = lin(ks[2], ks[3], fc1_dims, fc2_dims)
    w3, b3 = lin(ks[4], ks[5], fc2_dims, 1)
    return w1, b1, w2, b2, w3, b3


# TODO(synk): optimizer (Adam), checkpoint save/load and device placement from the
# PyTorch module are host-side concerns with no kernel equivalent; omitted.

if __name__ == "__main__":
    key = jax.random.PRNGKey(0)

    # input_dims=[6], action_dims=[2]  ->  Linear input dim = 6 + 2 = 8
    input_dims, action_dims = 6, 2
    in_dim = input_dims + action_dims
    batch = 32

    k_state, k_params = jax.random.split(key)
    # state = concat([observation, action], axis=-1), as TD3 critics consume it
    state = jax.random.normal(k_state, (batch, in_dim), jnp.float32)

    params = init_params(k_params, in_dim, fc1_dims=16, fc2_dims=16)
    w1, b1, w2, b2, w3, b3 = params

    # Pure-JAX reference with PyTorch semantics: x @ W.T + b
    ref = jnp.maximum(state @ w1.T + b1, 0.0)
    ref = jnp.maximum(ref @ w2.T + b2, 0.0)
    ref = ref @ w3.T + b3

    # f32 path (exact)
    value = critic_forward(state, *params, compute_dtype=jnp.float32)
    value = jax.block_until_ready(value)
    assert value.shape == (batch, 1)
    assert jnp.allclose(value, ref, atol=1e-5, rtol=1e-5)

    # bf16 streaming path (v6e / v7x recommendation); accumulation stays in f32.
    value_bf16 = critic_forward(state, *params, compute_dtype=jnp.bfloat16)
    value_bf16 = jax.block_until_ready(value_bf16)
    assert value_bf16.shape == (batch, 1)
    assert jnp.allclose(value_bf16, ref, atol=5e-2, rtol=5e-2)

    print("KERNEL_OK")
</pallas_src>

<mosaic_0001>
module attributes {stable_mosaic.version = 11 : i64} {
  func.func @critic_kernel(%arg0: i32, %arg1: memref<8x128xf32, #tpu.memory_space<vmem>>, %arg2: memref<16x8xf32, #tpu.memory_space<vmem>>, %arg3: memref<16x1xf32, #tpu.memory_space<vmem>>, %arg4: memref<16x16xf32, #tpu.memory_space<vmem>>, %arg5: memref<16x1xf32, #tpu.memory_space<vmem>>, %arg6: memref<16x1xf32, #tpu.memory_space<vmem>>, %arg7: memref<1x1xf32, #tpu.memory_space<vmem>>, %arg8: memref<1x128xf32, #tpu.memory_space<vmem>>) attributes {dimension_semantics = [#tpu.dimension_semantics<parallel>], iteration_bounds = array<i64: 1>, scalar_prefetch = 0 : i64, scratch_operands = 0 : i64, tpu.core_type = #tpu.core_type<tc>, window_params = [{transform_indices = @transform_0, window_bounds = array<i64: 8, 128>}, {pipeline_mode = #tpu.pipeline_mode<synchronous>, transform_indices = @transform_1, window_bounds = array<i64: 16, 8>}, {pipeline_mode = #tpu.pipeline_mode<synchronous>, transform_indices = @transform_2, window_bounds = array<i64: 16, 1>}, {pipeline_mode = #tpu.pipeline_mode<synchronous>, transform_indices = @transform_3, window_bounds = array<i64: 16, 16>}, {pipeline_mode = #tpu.pipeline_mode<synchronous>, transform_indices = @transform_4, window_bounds = array<i64: 16, 1>}, {pipeline_mode = #tpu.pipeline_mode<synchronous>, transform_indices = @transform_5, window_bounds = array<i64: 16, 1>}, {pipeline_mode = #tpu.pipeline_mode<synchronous>, transform_indices = @transform_6, window_bounds = array<i64: 1, 1>}, {transform_indices = @transform_7, window_bounds = array<i64: 1, 128>}]} {
    %c0 = arith.constant 0 : index
    %c0_0 = arith.constant 0 : index
    %0 = vector.load %arg1[%c0, %c0_0] : memref<8x128xf32, #tpu.memory_space<vmem>>, vector<8x128xf32>
    %c0_1 = arith.constant 0 : index
    %c0_2 = arith.constant 0 : index
    %1 = vector.load %arg2[%c0_1, %c0_2] : memref<16x8xf32, #tpu.memory_space<vmem>>, vector<16x8xf32>
    %cst = arith.constant dense<0.000000e+00> : vector<16x128xf32>
    %2 = tpu.matmul %1, %0, %cst {dimension_numbers = #tpu.dot_dimension_numbers<[1], [0], [0], [1], [0, 0, 1, 1], [], []>} : vector<16x8xf32>, vector<8x128xf32>, vector<16x128xf32> -> vector<16x128xf32>
    %c0_3 = arith.constant 0 : index
    %c0_4 = arith.constant 0 : index
    %3 = vector.load %arg3[%c0_3, %c0_4] : memref<16x1xf32, #tpu.memory_space<vmem>>, vector<16x1xf32>
    %4 = vector.broadcast %3 : vector<16x1xf32> to vector<16x128xf32>
    %5 = arith.addf %2, %4 : vector<16x128xf32>
    %cst_5 = arith.constant 0.000000e+00 : f32
    %6 = vector.broadcast %cst_5 : f32 to vector<16x128xf32>
    %7 = arith.maximumf %5, %6 : vector<16x128xf32>
    %c0_6 = arith.constant 0 : index
    %c0_7 = arith.constant 0 : index
    %8 = vector.load %arg4[%c0_6, %c0_7] : memref<16x16xf32, #tpu.memory_space<vmem>>, vector<16x16xf32>
    %cst_8 = arith.constant dense<0.000000e+00> : vector<16x128xf32>
    %9 = tpu.matmul %8, %7, %cst_8 {dimension_numbers = #tpu.dot_dimension_numbers<[1], [0], [0], [1], [0, 0, 1, 1], [], []>} : vector<16x16xf32>, vector<16x128xf32>, vector<16x128xf32> -> vector<16x128xf32>
    %c0_9 = arith.constant 0 : index
    %c0_10 = arith.constant 0 : index
    %10 = vector.load %arg5[%c0_9, %c0_10] : memref<16x1xf32, #tpu.memory_space<vmem>>, vector<16x1xf32>
    %11 = vector.broadcast %10 : vector<16x1xf32> to vector<16x128xf32>
    %12 = arith.addf %9, %11 : vector<16x128xf32>
    %cst_11 = arith.constant 0.000000e+00 : f32
    %13 = vector.broadcast %cst_11 : f32 to vector<16x128xf32>
    %14 = arith.maximumf %12, %13 : vector<16x128xf32>
    %c0_12 = arith.constant 0 : index
    %c0_13 = arith.constant 0 : index
    %15 = vector.load %arg6[%c0_12, %c0_13] : memref<16x1xf32, #tpu.memory_space<vmem>>, vector<16x1xf32>
    %16 = vector.broadcast %15 : vector<16x1xf32> to vector<16x128xf32>
    %17 = arith.mulf %16, %14 : vector<16x128xf32>
    %cst_14 = arith.constant dense<0.000000e+00> : vector<128xf32>
    %18 = vector.multi_reduction <add>, %17, %cst_14 [0] : vector<16x128xf32> to vector<128xf32>
    %19 = vector.shape_cast %18 : vector<128xf32> to vector<1x128xf32>
    %c0_15 = arith.constant 0 : index
    %c0_16 = arith.constant 0 : index
    %20 = vector.load %arg7[%c0_15, %c0_16] : memref<1x1xf32, #tpu.memory_space<vmem>>, vector<1x1xf32>
    %21 = vector.broadcast %20 : vector<1x1xf32> to vector<1x128xf32>
    %22 = arith.addf %19, %21 : vector<1x128xf32>
    %c0_17 = arith.constant 0 : index
    %c0_18 = arith.constant 0 : index
    %23 = vector.load %arg8[%c0_17, %c0_18] : memref<1x128xf32, #tpu.memory_space<vmem>>, vector<1x128xf32>
    tpu.vector_store %arg8[%c0_17, %c0_18], %22 {strides = array<i32>} : memref<1x128xf32, #tpu.memory_space<vmem>>, vector<1x128xf32>,
    return
  }
  func.func @transform_0(%arg0: i32) -> (i32, i32) {
    %c0_i32 = arith.constant 0 : i32
    %c0_i32_0 = arith.constant 0 : i32
    return %c0_i32, %arg0 : i32, i32
  }
  func.func @transform_1(%arg0: i32) -> (i32, i32) {
    %c0_i32 = arith.constant 0 : i32
    %c0_i32_0 = arith.constant 0 : i32
    %c0_i32_1 = arith.constant 0 : i32
    return %c0_i32, %c0_i32_0 : i32, i32
  }
  func.func @transform_2(%arg0: i32) -> (i32, i32) {
    %c0_i32 = arith.constant 0 : i32
    %c0_i32_0 = arith.constant 0 : i32
    %c0_i32_1 = arith.constant 0 : i32
    return %c0_i32, %c0_i32_0 : i32, i32
  }
  func.func @transform_3(%arg0: i32) -> (i32, i32) {
    %c0_i32 = arith.constant 0 : i32
    %c0_i32_0 = arith.constant 0 : i32
    %c0_i32_1 = arith.constant 0 : i32
    return %c0_i32, %c0_i32_0 : i32, i32
  }
  func.func @transform_4(%arg0: i32) -> (i32, i32) {
    %c0_i32 = arith.constant 0 : i32
    %c0_i32_0 = arith.constant 0 : i32
    %c0_i32_1 = arith.constant 0 : i32
    return %c0_i32, %c0_i32_0 : i32, i32
  }
  func.func @transform_5(%arg0: i32) -> (i32, i32) {
    %c0_i32 = arith.constant 0 : i32
    %c0_i32_0 = arith.constant 0 : i32
    %c0_i32_1 = arith.constant 0 : i32
    return %c0_i32, %c0_i32_0 : i32, i32
  }
  func.func @transform_6(%arg0: i32) -> (i32, i32) {
    %c0_i32 = arith.constant 0 : i32
    %c0_i32_0 = arith.constant 0 : i32
    %c0_i32_1 = arith.constant 0 : i32
    return %c0_i32, %c0_i32_0 : i32, i32
  }
  func.func @transform_7(%arg0: i32) -> (i32, i32) {
    %c0_i32 = arith.constant 0 : i32
    %c0_i32_0 = arith.constant 0 : i32
    return %c0_i32, %arg0 : i32, i32
  }
}

</mosaic_0001>

<llo_original>
// kernel: tpu_custom_call.1
$region0: #{tpu_custom_call.1}
  #allocation0 [shape = 'u32[]', space=smem, size = 0x4, offset = 0x4, fixed_abs, tag = 'smem constant byte address 0x4 - core index']
  #allocation1 [shape = 'u32[72,128]{1,0:T(1,128)}', space=vmem, size = 0x9000, scoped, tag = 'internal scratch']
  #allocation2 [shape = 'f32[1,1]{1,0:T(1,128)S(1)}', space=vmem, size = 0x200, scoped, tag = 'scoped memory for tpu_custom_call.1']
  %s0 = inlined_call_operand.vmem [shape: f32[8,128], index: 0, kind: input, shape index: {}]
  %s1 = inlined_call_operand.vmem [shape: f32[16,8], index: 1, kind: input, shape index: {}]
  %s2 = inlined_call_operand.vmem [shape: f32[16,1], index: 2, kind: input, shape index: {}]
  %s3 = inlined_call_operand.vmem [shape: f32[16,16], index: 3, kind: input, shape index: {}]
  %s4 = inlined_call_operand.vmem [shape: f32[16,1], index: 4, kind: input, shape index: {}]
  %s5 = inlined_call_operand.vmem [shape: f32[16,1], index: 5, kind: input, shape index: {}]
  %s6 = inlined_call_operand.<no memory space> [shape: f32[1,1], index: 6, kind: input, shape index: {}]
  %s7 = inlined_call_operand.hbm [shape: f32[1,128], index: 7, kind: output, shape index: {}]
  %s8 = sld [smem:[#allocation0]]
  $region38: #{tpu_custom_call.1} parent=0
    _
  %s10 = ssub.s32 1, %s8
  %s11 = scalar_select 0, %s10, %s8
  %v12 = vstv %s6
  %13 = vst [vmem:[#allocation2] sm:$0x1] %v12
  $region1: #{tpu_custom_call.1} parent=0
    #allocation3 [shape = 'u8[512]{0}', space=vmem, size = 0x400, scoped, tag = 'output window, operand 0, single buffered']
    #allocation4 [shape = 's32[1]{0}', space=sflag, size = 0x4, scoped, tag = 'scoped memory for tpu_custom_call.1']
    %14 = vsyncpa [#allocation4], 0
    // Predicated region
    $region2: #{tpu_custom_call.1} parent=1 // pred_check
      _
    $region3: #{tpu_custom_call.1} parent=1 // pred_check_branch
      %16 = sbr.rel (0) target = $region5
    $region4: #{tpu_custom_call.1} parent=1 // pred_region
      _
    $region5: #{tpu_custom_call.1} parent=1 // pred_fallthru
      _
    // Predicated region
    $region6: #{tpu_custom_call.1} parent=1 // pred_check
      _
    $region7: #{tpu_custom_call.1} parent=1 // pred_check_branch
      %18 = sbr.rel (0) target = $region9
    $region8: #{tpu_custom_call.1} parent=1 // pred_region
      _
    $region9: #{tpu_custom_call.1} parent=1 // pred_fallthru
      _
    // Predicated region
    $region10: #{tpu_custom_call.1} parent=1 // pred_check
      _
    $region11: #{tpu_custom_call.1} parent=1 // pred_check_branch
      %20 = sbr.rel (0) target = $region13
    $region12: #{tpu_custom_call.1} parent=1 // pred_region
      _
    $region13: #{tpu_custom_call.1} parent=1 // pred_fallthru
      _
    // Predicated region
    $region14: #{tpu_custom_call.1} parent=1 // pred_check
      _
    $region15: #{tpu_custom_call.1} parent=1 // pred_check_branch
      %22 = sbr.rel (0) target = $region17
    $region16: #{tpu_custom_call.1} parent=1 // pred_region
      _
    $region17: #{tpu_custom_call.1} parent=1 // pred_fallthru
      _
    // Predicated region
    $region18: #{tpu_custom_call.1} parent=1 // pred_check
      _
    $region19: #{tpu_custom_call.1} parent=1 // pred_check_branch
      %24 = sbr.rel (0) target = $region21
    $region20: #{tpu_custom_call.1} parent=1 // pred_region
      _
    $region21: #{tpu_custom_call.1} parent=1 // pred_fallthru
      _
    // Predicated region
    $region22: #{tpu_custom_call.1} parent=1 // pred_check
      _
    $region23: #{tpu_custom_call.1} parent=1 // pred_check_branch
      %26 = sbr.rel (0) target = $region25
    $region24: #{tpu_custom_call.1} parent=1 // pred_region
      _
    $region25: #{tpu_custom_call.1} parent=1 // pred_fallthru
      _
    // Predicated region
    $region26: #{tpu_custom_call.1} parent=1 // pred_check
      _
    $region27: #{tpu_custom_call.1} parent=1 // pred_check_branch
      %28 = sbr.rel (0) target = $region29
    $region28: #{tpu_custom_call.1} parent=1 // pred_region
      _
    $region29: #{tpu_custom_call.1} parent=1 // pred_fallthru
      _
    %v29 = vld [vmem:[%s0] sm:$0xff]
    %v30 = vld [vmem:[%s1] sm:$0xff]
    %v31 = vld [vmem:[%s1 + $0x8] sm:$0xff]
    %v32 = vld [vmem:[%s2] sm:$0xff]
    %v33 = vld [vmem:[%s2 + $0x8] sm:$0xff]
    %35 = vset.pattern.permute.xlu0 0
    %36 = vperm.xlu0 %35, %v32
    %v37 = vpop.permute.xlu0 %36
    %40 = vset.pattern.permute.xlu0 0
    %41 = vperm.xlu0 %40, %v33
    %v42 = vpop.permute.xlu0 %41
    %vm44 = vcmask 64512
    %v46 = vsel %vm44, %v30, 0
    %v49 = vsel %vm44, %v31, 0
    %51 = vmatpush.msra.mxu0 0.0
    %52 = vmatpush.msra.mxu0 0.0
    %53 = vmatpush.msra.mxu0 0.0
    %54 = vmatpush.msra.mxu0 0.0
    %55 = vmatpush.msra.mxu0 0.0
    %56 = vmatpush.msra.mxu0 0.0
    %57 = vmatpush.msra.mxu0 0.0
    %58 = vmatpush.msra.mxu0 0.0
    %59 = vmatpush.msra.mxu0 0.0
    %60 = vmatpush.msra.mxu0 0.0
    %61 = vmatpush.msra.mxu0 0.0
    %62 = vmatpush.msra.mxu0 0.0
    %63 = vmatpush.msra.mxu0 0.0
    %64 = vmatpush.msra.mxu0 0.0
    %65 = vmatpush.msra.mxu0 0.0
    %66 = vmatpush.msra.mxu0 %v29
    %67 = vmatmul.f32.gmra.mxu0 %v46
    %v68 = vpop.f32.mrf.mxu0
    %v69 = vadd.f32 %v37, %v68
    %70 = vmatmul.f32.gmra.mxu0 %v49
    %v71 = vpop.f32.mrf.mxu0
    %v72 = vadd.f32 %v42, %v71
    %73 = vdwg.mxu0
    %v74 = vmax.f32 %v69, 0.0
    %v75 = vmax.f32 %v72, 0.0
    %v76 = vld [vmem:[%s3] sm:$0xff]
    %v77 = vld [vmem:[%s3 + $0x8] sm:$0xff]
    %v78 = vld [vmem:[%s4] sm:$0xff]
    %v79 = vld [vmem:[%s4 + $0x8] sm:$0xff]
    %81 = vset.pattern.permute.xlu0 0
    %82 = vperm.xlu0 %81, %v78
    %v83 = vpop.permute.xlu0 %82
    %86 = vset.pattern.permute.xlu0 0
    %87 = vperm.xlu0 %86, %v79
    %v88 = vpop.permute.xlu0 %87
    %vm90 = vcmask 130048
    %v92 = vsel %vm90, %v76, 0
    %v95 = vsel %vm90, %v77, 0
    %97 = vmatpush.msra.mxu0 0.0
    %98 = vmatpush.msra.mxu0 0.0
    %99 = vmatpush.msra.mxu0 0.0
    %100 = vmatpush.msra.mxu0 0.0
    %101 = vmatpush.msra.mxu0 0.0
    %102 = vmatpush.msra.mxu0 0.0
    %103 = vmatpush.msra.mxu0 0.0
    %104 = vmatpush.msra.mxu0 0.0
    %105 = vmatpush.msra.mxu0 0.0
    %106 = vmatpush.msra.mxu0 0.0
    %107 = vmatpush.msra.mxu0 0.0
    %108 = vmatpush.msra.mxu0 0.0
    %109 = vmatpush.msra.mxu0 0.0
    %110 = vmatpush.msra.mxu0 0.0
    %111 = vmatpush.msra.mxu0 %v75
    %112 = vmatpush.msra.mxu0 %v74
    %113 = vmatmul.f32.gmra.mxu0 %v92
    %v114 = vpop.f32.mrf.mxu0
    %v115 = vadd.f32 %v83, %v114
    %116 = vmatmul.f32.gmra.mxu0 %v95
    %v117 = vpop.f32.mrf.mxu0
    %v118 = vadd.f32 %v88, %v117
    %119 = vdwg.mxu0
    %v120 = vmax.f32 %v115, 0.0
    %v121 = vmax.f32 %v118, 0.0
    %v122 = vld [vmem:[%s5] sm:$0xff]
    %v123 = vld [vmem:[%s5 + $0x8] sm:$0xff]
    %125 = vset.pattern.permute.xlu0 0
    %126 = vperm.xlu0 %125, %v122
    %v127 = vpop.permute.xlu0 %126
    %130 = vset.pattern.permute.xlu0 0
    %131 = vperm.xlu0 %130, %v123
    %v132 = vpop.permute.xlu0 %131
    %v134 = vmul.f32 %v127, %v120
    %v135 = vmul.f32 %v132, %v121
    %v136 = vadd.f32 %v134, %v135
    %v137 = vrot.slane %v136, 4
    %v138 = vadd.f32 %v136, %v137
    %v139 = vrot.slane %v138, 2
    %v140 = vadd.f32 %v138, %v139
    %v141 = vrot.slane %v140, 1
    %v142 = vadd.f32 %v140, %v141
    %v143 = vld [vmem:[#allocation2] sm:$0x1]
    %145 = vset.pattern.permute.xlu0 0
    %146 = vperm.xlu0 %145, %v143
    %v147 = vpop.permute.xlu0 %146
    %v149 = vperm.slane %v147, 0
    %v150 = vadd.f32 %v142, %v149
    %151 = vst [vmem:[#allocation3] sm:$0x1] %v150
    // Predicated region
    $region30: #{tpu_custom_call.1} parent=1 // pred_check
      _
    $region31: #{tpu_custom_call.1} parent=1 // pred_check_branch
      %153 = sbr.rel (0) target = $region33
    $region32: #{tpu_custom_call.1} parent=1 // pred_region
      %155 = vsyncadd [#allocation4], 0
      %s157 = sshll.u32 [#allocation3], 4
      %s158 = int_to_ptr.vmem [resolvable:$true] %s157
      %s159 = sshll.u32 %s7, 4
      %s160 = int_to_ptr.hbm [resolvable:$true] %s159
      %162 = dma.vmem_to_hbm [thread:$0]  %s158, 16, %s160, [#allocation4]
    $region33: #{tpu_custom_call.1} parent=1 // pred_fallthru
      _
    // Predicated region
    $region34: #{tpu_custom_call.1} parent=1 // pred_check
      _
    $region35: #{tpu_custom_call.1} parent=1 // pred_check_branch
      %164 = sbr.rel (0) target = $region37
    $region36: #{tpu_custom_call.1} parent=1 // pred_region
      %166 = dma.done [#allocation4], 16
    $region37: #{tpu_custom_call.1} parent=1 // pred_fallthru
      _
    %167 = vsyncpa [#allocation4], 1

</llo_original>
